<compile_context>
chip_gen: v5e
topology: v5e:2x2
jax: 0.10.0
libtpu: 0.0.40
codegen_flags: <defaults>
</compile_context>

<pallas_src>
import math

import jax
import jax.numpy as jnp
from jax.experimental import pallas as pl
from jax.experimental.pallas import tpu as pltpu


def _round_up(n, m):
    return ((n + m - 1) // m) * m


def _dueling_net_kernel(xT_ref,
                        w1_ref, b1_ref,
                        w2_ref, b2_ref,
                        w3_ref, b3_ref,
                        wh_ref, bh_ref,
                        qT_ref):
    """Transposed (batch-on-lanes) dueling-DQN forward for one batch tile.

    xT_ref: [Sp, TB]   (Sp = state_dim padded to 8, TB = batch tile, mult of 128)
    w*:     [out, in]  (PyTorch orientation), b*: [out, 1]
    qT_ref: [A, TB]
    All math is f32; matmuls run on the MXU with f32 accumulation.
    """
    # fc1 + relu : [128, Sp] @ [Sp, TB] -> [128, TB]
    h1 = jnp.dot(w1_ref[...], xT_ref[...],
                 preferred_element_type=jnp.float32) + b1_ref[...]
    h1 = jnp.maximum(h1, 0.0)

    # fc2 + relu : [64, 128] @ [128, TB] -> [64, TB]
    h2 = jnp.dot(w2_ref[...], h1,
                 preferred_element_type=jnp.float32) + b2_ref[...]
    h2 = jnp.maximum(h2, 0.0)

    # fc3 + relu : [16, 64] @ [64, TB] -> [16, TB]
    h3 = jnp.dot(w3_ref[...], h2,
                 preferred_element_type=jnp.float32) + b3_ref[...]
    h3 = jnp.maximum(h3, 0.0)

    # fused heads : [Hp, 16] @ [16, TB] -> [Hp, TB]
    #   rows [0:A]   = advantage head (Adan)
    #   row  [A]     = value head (V)
    #   rows [A+1:]  = zero padding (ignored)
    head = jnp.dot(wh_ref[...], h3,
                   preferred_element_type=jnp.float32) + bh_ref[...]

    a_dim = qT_ref.shape[0]
    adv = head[:a_dim, :]              # [A, TB]
    v = head[a_dim:a_dim + 1, :]       # [1, TB]

    # dueling combination: q = v + (adv - mean(adv over actions))
    adv_avg = jnp.mean(adv, axis=0, keepdims=True)
    qT_ref[...] = (v + (adv - adv_avg)).astype(qT_ref.dtype)


def dueling_net_forward(x, params, *, block_b=2048):
    """Dueling-DQN forward pass via one batch-tiled Pallas call.

    x:      [B, state_dim] float32
    params: prepared params from prepare_params() (weights [out, in], biases
            [out, 1], fc1 in-dim padded to 8, heads fused/padded, plus "a_dim")
    returns: [B, action_dim] float32
    """
    B, S = x.shape
    A = params["a_dim"]
    Hp = params["wh"].shape[0]          # padded fused-head rows (>= A + 1)
    Sp = params["w1"].shape[1]          # padded input features (>= S)

    LANE = 128
    block_b = _round_up(max(block_b, LANE), LANE)

    # Batch tiles are multiples of 128 (lane axis); aim for >= 2 tiles so the
    # "parallel" grid axis can shard over both v7x TensorCores.
    Bp0 = _round_up(B, LANE)
    TB = min(block_b, max(LANE, _round_up(pl.cdiv(Bp0, 2), LANE)))
    Bp = _round_up(Bp0, TB)
    grid = (Bp // TB,)

    # Wrapper-side layout plumbing: pad features/batch and transpose so the
    # kernel sees x^T = [Sp, Bp] with the batch on the 128-lane axis.
    xT = jnp.pad(x, ((0, Bp - B), (0, Sp - S))).T

    const = lambda i: (0, 0)            # weights/biases stay VMEM-resident
    in_specs = [
        pl.BlockSpec((Sp, TB), lambda i: (0, i)),   # x^T tiled over batch lanes
        pl.BlockSpec(params["w1"].shape, const),
        pl.BlockSpec(params["b1"].shape, const),
        pl.BlockSpec(params["w2"].shape, const),
        pl.BlockSpec(params["b2"].shape, const),
        pl.BlockSpec(params["w3"].shape, const),
        pl.BlockSpec(params["b3"].shape, const),
        pl.BlockSpec(params["wh"].shape, const),
        pl.BlockSpec(params["bh"].shape, const),
    ]
    out_spec = pl.BlockSpec((A, TB), lambda i: (0, i))

    flops = 2 * Bp * (Sp * 128 + 128 * 64 + 64 * 16 + 16 * Hp)
    weight_bytes = sum(int(v.size) * v.dtype.itemsize
                       for k, v in params.items() if k != "a_dim")
    bytes_accessed = Bp * Sp * 4 + Bp * A * 4 + weight_bytes
    cost = pl.CostEstimate(flops=int(flops), transcendentals=0,
                           bytes_accessed=int(bytes_accessed))

    qT = pl.pallas_call(
        _dueling_net_kernel,
        out_shape=jax.ShapeDtypeStruct((A, Bp), jnp.float32),
        grid=grid,
        in_specs=in_specs,
        out_specs=out_spec,
        compiler_params=pltpu.CompilerParams(
            dimension_semantics=("parallel",)),     # megacore-shard batch on v7x
        cost_estimate=cost,
    )(xT,
      params["w1"], params["b1"],
      params["w2"], params["b2"],
      params["w3"], params["b3"],
      params["wh"], params["bh"])

    return qT.T[:B]


def init_params(key, state_dim, action_dim):
    """Deterministic init mimicking PyTorch Linear defaults (U[-1/sqrt(fan_in)]).

    Weights kept in native PyTorch orientation [out_features, in_features]."""
    def linear(k, fan_in, fan_out):
        kw, kb = jax.random.split(k)
        bound = 1.0 / math.sqrt(fan_in)
        w = jax.random.uniform(kw, (fan_out, fan_in), jnp.float32, -bound, bound)
        b = jax.random.uniform(kb, (fan_out,), jnp.float32, -bound, bound)
        return w, b

    k1, k2, k3, ka, kv = jax.random.split(key, 5)
    w1, b1 = linear(k1, state_dim, 128)
    w2, b2 = linear(k2, 128, 64)
    w3, b3 = linear(k3, 64, 16)
    wa, ba = linear(ka, 16, action_dim)
    wv, bv = linear(kv, 16, 1)
    return dict(w1=w1, b1=b1, w2=w2, b2=b2, w3=w3, b3=b3,
                wa=wa, ba=ba, wv=wv, bv=bv)


def prepare_params(raw, state_dim, action_dim):
    """One-time prep for the transposed kernel layout (all f32):
       * fc1 in-dim zero-padded up to 8 so the K axis is MXU/sublane aligned
       * advantage + value heads fused ([A+1, 16]) and zero-padded to 8 rows
       * biases reshaped to [out, 1] (broadcast over the lane/batch axis)."""
    Sp = _round_up(max(state_dim, 1), 8)
    Hp = _round_up(action_dim + 1, 8)

    w1 = jnp.pad(raw["w1"], ((0, 0), (0, Sp - state_dim)))        # [128, Sp]
    wh = jnp.concatenate([raw["wa"], raw["wv"]], axis=0)          # [A+1, 16]
    bh = jnp.concatenate([raw["ba"], raw["bv"]], axis=0)          # [A+1]
    wh = jnp.pad(wh, ((0, Hp - (action_dim + 1)), (0, 0)))        # [Hp, 16]
    bh = jnp.pad(bh, ((0, Hp - (action_dim + 1)),))               # [Hp]

    col = lambda b: b.reshape(-1, 1).astype(jnp.float32)
    return dict(
        w1=w1.astype(jnp.float32), b1=col(raw["b1"]),
        w2=raw["w2"].astype(jnp.float32), b2=col(raw["b2"]),
        w3=raw["w3"].astype(jnp.float32), b3=col(raw["b3"]),
        wh=wh.astype(jnp.float32), bh=col(bh),
        a_dim=action_dim,
    )


def _reference_forward(x, raw):
    """Pure-JAX f32 reference of the original PyTorch module."""
    h = jnp.maximum(x @ raw["w1"].T + raw["b1"], 0.0)
    h = jnp.maximum(h @ raw["w2"].T + raw["b2"], 0.0)
    h = jnp.maximum(h @ raw["w3"].T + raw["b3"], 0.0)
    adv = h @ raw["wa"].T + raw["ba"]
    v = h @ raw["wv"].T + raw["bv"]
    return v + (adv - jnp.mean(adv, axis=-1, keepdims=True))


if __name__ == "__main__":
    # CartPole-like problem: state_dim=4, action_dim=2.
    state_dim, action_dim = 4, 2

    key = jax.random.PRNGKey(0)
    kx, kx2, kp = jax.random.split(key, 3)
    raw = init_params(kp, state_dim, action_dim)
    params = prepare_params(raw, state_dim, action_dim)

    # Small batch: single-tile grid.
    x = jax.random.normal(kx, (50, state_dim), dtype=jnp.float32)
    q = jax.block_until_ready(dueling_net_forward(x, params))
    assert q.shape == (50, action_dim)
    q_ref = _reference_forward(x, raw)
    assert jnp.allclose(q, q_ref, atol=2e-2, rtol=2e-2), \
        "mismatch vs f32 reference (small batch)"

    # Larger batch with a small block_b: exercises a 2-step parallel grid
    # (both v7x TCs) plus tail padding that is sliced off.
    x2 = jax.random.normal(kx2, (300, state_dim), dtype=jnp.float32)
    q2 = jax.block_until_ready(dueling_net_forward(x2, params, block_b=256))
    assert q2.shape == (300, action_dim)
    q2_ref = _reference_forward(x2, raw)
    assert jnp.allclose(q2, q2_ref, atol=2e-2, rtol=2e-2), \
        "mismatch vs f32 reference (multi-tile batch)"

    # DQN action-selection agreement: argmax must match unless the top-2
    # Q-values are within numeric noise of each other.
    for qk, qr in ((q, q_ref), (q2, q2_ref)):
        srt = jnp.sort(qr, axis=-1)
        gap = srt[:, -1] - srt[:, -2]
        agree = (jnp.argmax(qk, axis=-1) == jnp.argmax(qr, axis=-1)) | (gap < 5e-2)
        assert bool(jnp.all(agree)), "action-selection mismatch vs reference"

    print("KERNEL_OK")
</pallas_src>

<mosaic_0001>
module attributes {stable_mosaic.version = 11 : i64} {
  func.func @_dueling_net_kernel(%arg0: i32, %arg1: memref<8x128xf32, #tpu.memory_space<vmem>>, %arg2: memref<128x8xf32, #tpu.memory_space<vmem>>, %arg3: memref<128x1xf32, #tpu.memory_space<vmem>>, %arg4: memref<64x128xf32, #tpu.memory_space<vmem>>, %arg5: memref<64x1xf32, #tpu.memory_space<vmem>>, %arg6: memref<16x64xf32, #tpu.memory_space<vmem>>, %arg7: memref<16x1xf32, #tpu.memory_space<vmem>>, %arg8: memref<8x16xf32, #tpu.memory_space<vmem>>, %arg9: memref<8x1xf32, #tpu.memory_space<vmem>>, %arg10: memref<2x128xf32, #tpu.memory_space<vmem>>) attributes {dimension_semantics = [#tpu.dimension_semantics<parallel>], iteration_bounds = array<i64: 1>, scalar_prefetch = 0 : i64, scratch_operands = 0 : i64, tpu.core_type = #tpu.core_type<tc>, window_params = [{transform_indices = @transform_0, window_bounds = array<i64: 8, 128>}, {pipeline_mode = #tpu.pipeline_mode<synchronous>, transform_indices = @transform_1, window_bounds = array<i64: 128, 8>}, {pipeline_mode = #tpu.pipeline_mode<synchronous>, transform_indices = @transform_2, window_bounds = array<i64: 128, 1>}, {pipeline_mode = #tpu.pipeline_mode<synchronous>, transform_indices = @transform_3, window_bounds = array<i64: 64, 128>}, {pipeline_mode = #tpu.pipeline_mode<synchronous>, transform_indices = @transform_4, window_bounds = array<i64: 64, 1>}, {pipeline_mode = #tpu.pipeline_mode<synchronous>, transform_indices = @transform_5, window_bounds = array<i64: 16, 64>}, {pipeline_mode = #tpu.pipeline_mode<synchronous>, transform_indices = @transform_6, window_bounds = array<i64: 16, 1>}, {pipeline_mode = #tpu.pipeline_mode<synchronous>, transform_indices = @transform_7, window_bounds = array<i64: 8, 16>}, {pipeline_mode = #tpu.pipeline_mode<synchronous>, transform_indices = @transform_8, window_bounds = array<i64: 8, 1>}, {transform_indices = @transform_9, window_bounds = array<i64: 2, 128>}]} {
    %c0 = arith.constant 0 : index
    %c0_0 = arith.constant 0 : index
    %0 = vector.load %arg2[%c0, %c0_0] : memref<128x8xf32, #tpu.memory_space<vmem>>, vector<128x8xf32>
    %c0_1 = arith.constant 0 : index
    %c0_2 = arith.constant 0 : index
    %1 = vector.load %arg1[%c0_1, %c0_2] : memref<8x128xf32, #tpu.memory_space<vmem>>, vector<8x128xf32>
    %cst = arith.constant dense<0.000000e+00> : vector<128x128xf32>
    %2 = tpu.matmul %0, %1, %cst {dimension_numbers = #tpu.dot_dimension_numbers<[1], [0], [0], [1], [0, 0, 1, 1], [], []>} : vector<128x8xf32>, vector<8x128xf32>, vector<128x128xf32> -> vector<128x128xf32>
    %c0_3 = arith.constant 0 : index
    %c0_4 = arith.constant 0 : index
    %3 = vector.load %arg3[%c0_3, %c0_4] : memref<128x1xf32, #tpu.memory_space<vmem>>, vector<128x1xf32>
    %4 = vector.broadcast %3 : vector<128x1xf32> to vector<128x128xf32>
    %5 = arith.addf %2, %4 : vector<128x128xf32>
    %cst_5 = arith.constant 0.000000e+00 : f32
    %6 = vector.broadcast %cst_5 : f32 to vector<128x128xf32>
    %7 = arith.maximumf %5, %6 : vector<128x128xf32>
    %c0_6 = arith.constant 0 : index
    %c0_7 = arith.constant 0 : index
    %8 = vector.load %arg4[%c0_6, %c0_7] : memref<64x128xf32, #tpu.memory_space<vmem>>, vector<64x128xf32>
    %cst_8 = arith.constant dense<0.000000e+00> : vector<64x128xf32>
    %9 = tpu.matmul %8, %7, %cst_8 {dimension_numbers = #tpu.dot_dimension_numbers<[1], [0], [0], [1], [0, 0, 1, 1], [], []>} : vector<64x128xf32>, vector<128x128xf32>, vector<64x128xf32> -> vector<64x128xf32>
    %c0_9 = arith.constant 0 : index
    %c0_10 = arith.constant 0 : index
    %10 = vector.load %arg5[%c0_9, %c0_10] : memref<64x1xf32, #tpu.memory_space<vmem>>, vector<64x1xf32>
    %11 = vector.broadcast %10 : vector<64x1xf32> to vector<64x128xf32>
    %12 = arith.addf %9, %11 : vector<64x128xf32>
    %cst_11 = arith.constant 0.000000e+00 : f32
    %13 = vector.broadcast %cst_11 : f32 to vector<64x128xf32>
    %14 = arith.maximumf %12, %13 : vector<64x128xf32>
    %c0_12 = arith.constant 0 : index
    %c0_13 = arith.constant 0 : index
    %15 = vector.load %arg6[%c0_12, %c0_13] : memref<16x64xf32, #tpu.memory_space<vmem>>, vector<16x64xf32>
    %cst_14 = arith.constant dense<0.000000e+00> : vector<16x128xf32>
    %16 = tpu.matmul %15, %14, %cst_14 {dimension_numbers = #tpu.dot_dimension_numbers<[1], [0], [0], [1], [0, 0, 1, 1], [], []>} : vector<16x64xf32>, vector<64x128xf32>, vector<16x128xf32> -> vector<16x128xf32>
    %c0_15 = arith.constant 0 : index
    %c0_16 = arith.constant 0 : index
    %17 = vector.load %arg7[%c0_15, %c0_16] : memref<16x1xf32, #tpu.memory_space<vmem>>, vector<16x1xf32>
    %18 = vector.broadcast %17 : vector<16x1xf32> to vector<16x128xf32>
    %19 = arith.addf %16, %18 : vector<16x128xf32>
    %cst_17 = arith.constant 0.000000e+00 : f32
    %20 = vector.broadcast %cst_17 : f32 to vector<16x128xf32>
    %21 = arith.maximumf %19, %20 : vector<16x128xf32>
    %c0_18 = arith.constant 0 : index
    %c0_19 = arith.constant 0 : index
    %22 = vector.load %arg8[%c0_18, %c0_19] : memref<8x16xf32, #tpu.memory_space<vmem>>, vector<8x16xf32>
    %cst_20 = arith.constant dense<0.000000e+00> : vector<8x128xf32>
    %23 = tpu.matmul %22, %21, %cst_20 {dimension_numbers = #tpu.dot_dimension_numbers<[1], [0], [0], [1], [0, 0, 1, 1], [], []>} : vector<8x16xf32>, vector<16x128xf32>, vector<8x128xf32> -> vector<8x128xf32>
    %c0_21 = arith.constant 0 : index
    %c0_22 = arith.constant 0 : index
    %24 = vector.load %arg9[%c0_21, %c0_22] : memref<8x1xf32, #tpu.memory_space<vmem>>, vector<8x1xf32>
    %25 = vector.broadcast %24 : vector<8x1xf32> to vector<8x128xf32>
    %26 = arith.addf %23, %25 : vector<8x128xf32>
    %27 = vector.extract_strided_slice %26 {offsets = [0, 0], sizes = [2, 128], strides = [1, 1]} : vector<8x128xf32> to vector<2x128xf32>
    %28 = vector.extract_strided_slice %26 {offsets = [2, 0], sizes = [1, 128], strides = [1, 1]} : vector<8x128xf32> to vector<1x128xf32>
    %cst_23 = arith.constant dense<0.000000e+00> : vector<128xf32>
    %29 = vector.multi_reduction <add>, %27, %cst_23 [0] : vector<2x128xf32> to vector<128xf32>
    %30 = vector.shape_cast %29 : vector<128xf32> to vector<1x128xf32>
    %cst_24 = arith.constant 2.000000e+00 : f32
    %31 = vector.broadcast %cst_24 : f32 to vector<1x128xf32>
    %32 = arith.divf %30, %31 : vector<1x128xf32>
    %33 = vector.broadcast %32 : vector<1x128xf32> to vector<2x128xf32>
    %34 = arith.subf %27, %33 : vector<2x128xf32>
    %35 = vector.broadcast %28 : vector<1x128xf32> to vector<2x128xf32>
    %36 = arith.addf %35, %34 : vector<2x128xf32>
    %c0_25 = arith.constant 0 : index
    %c0_26 = arith.constant 0 : index
    %37 = vector.load %arg10[%c0_25, %c0_26] : memref<2x128xf32, #tpu.memory_space<vmem>>, vector<2x128xf32>
    tpu.vector_store %arg10[%c0_25, %c0_26], %36 {strides = array<i32>} : memref<2x128xf32, #tpu.memory_space<vmem>>, vector<2x128xf32>,
    return
  }
  func.func @transform_0(%arg0: i32) -> (i32, i32) {
    %c0_i32 = arith.constant 0 : i32
    %c0_i32_0 = arith.constant 0 : i32
    return %c0_i32, %arg0 : i32, i32
  }
  func.func @transform_1(%arg0: i32) -> (i32, i32) {
    %c0_i32 = arith.constant 0 : i32
    %c0_i32_0 = arith.constant 0 : i32
    %c0_i32_1 = arith.constant 0 : i32
    return %c0_i32, %c0_i32_0 : i32, i32
  }
  func.func @transform_2(%arg0: i32) -> (i32, i32) {
    %c0_i32 = arith.constant 0 : i32
    %c0_i32_0 = arith.constant 0 : i32
    %c0_i32_1 = arith.constant 0 : i32
    return %c0_i32, %c0_i32_0 : i32, i32
  }
  func.func @transform_3(%arg0: i32) -> (i32, i32) {
    %c0_i32 = arith.constant 0 : i32
    %c0_i32_0 = arith.constant 0 : i32
    %c0_i32_1 = arith.constant 0 : i32
    return %c0_i32, %c0_i32_0 : i32, i32
  }
  func.func @transform_4(%arg0: i32) -> (i32, i32) {
    %c0_i32 = arith.constant 0 : i32
    %c0_i32_0 = arith.constant 0 : i32
    %c0_i32_1 = arith.constant 0 : i32
    return %c0_i32, %c0_i32_0 : i32, i32
  }
  func.func @transform_5(%arg0: i32) -> (i32, i32) {
    %c0_i32 = arith.constant 0 : i32
    %c0_i32_0 = arith.constant 0 : i32
    %c0_i32_1 = arith.constant 0 : i32
    return %c0_i32, %c0_i32_0 : i32, i32
  }
  func.func @transform_6(%arg0: i32) -> (i32, i32) {
    %c0_i32 = arith.constant 0 : i32
    %c0_i32_0 = arith.constant 0 : i32
    %c0_i32_1 = arith.constant 0 : i32
    return %c0_i32, %c0_i32_0 : i32, i32
  }
  func.func @transform_7(%arg0: i32) -> (i32, i32) {
    %c0_i32 = arith.constant 0 : i32
    %c0_i32_0 = arith.constant 0 : i32
    %c0_i32_1 = arith.constant 0 : i32
    return %c0_i32, %c0_i32_0 : i32, i32
  }
  func.func @transform_8(%arg0: i32) -> (i32, i32) {
    %c0_i32 = arith.constant 0 : i32
    %c0_i32_0 = arith.constant 0 : i32
    %c0_i32_1 = arith.constant 0 : i32
    return %c0_i32, %c0_i32_0 : i32, i32
  }
  func.func @transform_9(%arg0: i32) -> (i32, i32) {
    %c0_i32 = arith.constant 0 : i32
    %c0_i32_0 = arith.constant 0 : i32
    return %c0_i32, %arg0 : i32, i32
  }
}

</mosaic_0001>

<llo_original>
// kernel: tpu_custom_call.1
$region0: #{tpu_custom_call.1}
  #allocation0 [shape = 'u32[]', space=smem, size = 0x4, offset = 0x4, fixed_abs, tag = 'smem constant byte address 0x4 - core index']
  #allocation1 [shape = 'u32[72,128]{1,0:T(1,128)}', space=vmem, size = 0x9000, scoped, tag = 'internal scratch']
  %s0 = inlined_call_operand.vmem [shape: f32[8,128], index: 0, kind: input, shape index: {}]
  %s1 = inlined_call_operand.vmem [shape: f32[128,8], index: 1, kind: input, shape index: {}]
  %s2 = inlined_call_operand.vmem [shape: f32[128,1], index: 2, kind: input, shape index: {}]
  %s3 = inlined_call_operand.vmem [shape: f32[64,128], index: 3, kind: input, shape index: {}]
  %s4 = inlined_call_operand.vmem [shape: f32[64,1], index: 4, kind: input, shape index: {}]
  %s5 = inlined_call_operand.vmem [shape: f32[16,64], index: 5, kind: input, shape index: {}]
  %s6 = inlined_call_operand.vmem [shape: f32[16,1], index: 6, kind: input, shape index: {}]
  %s7 = inlined_call_operand.vmem [shape: f32[8,16], index: 7, kind: input, shape index: {}]
  %s8 = inlined_call_operand.vmem [shape: f32[8,1], index: 8, kind: input, shape index: {}]
  %s9 = inlined_call_operand.hbm [shape: f32[2,128], index: 9, kind: output, shape index: {}]
  %s10 = sld [smem:[#allocation0]]
  $region46: #{tpu_custom_call.1} parent=0
    _
  %s12 = ssub.s32 1, %s10
  %s13 = scalar_select 0, %s12, %s10
  $region1: #{tpu_custom_call.1} parent=0
    #allocation2 [shape = 'u8[1024]{0}', space=vmem, size = 0x400, scoped, tag = 'output window, operand 0, single buffered']
    #allocation3 [shape = 's32[1]{0}', space=sflag, size = 0x4, scoped, tag = 'scoped memory for tpu_custom_call.1']
    %14 = vsyncpa [#allocation3], 0
    // Predicated region
    $region2: #{tpu_custom_call.1} parent=1 // pred_check
      _
    $region3: #{tpu_custom_call.1} parent=1 // pred_check_branch
      %16 = sbr.rel (0) target = $region5
    $region4: #{tpu_custom_call.1} parent=1 // pred_region
      _
    $region5: #{tpu_custom_call.1} parent=1 // pred_fallthru
      _
    // Predicated region
    $region6: #{tpu_custom_call.1} parent=1 // pred_check
      _
    $region7: #{tpu_custom_call.1} parent=1 // pred_check_branch
      %18 = sbr.rel (0) target = $region9
    $region8: #{tpu_custom_call.1} parent=1 // pred_region
      _
    $region9: #{tpu_custom_call.1} parent=1 // pred_fallthru
      _
    // Predicated region
    $region10: #{tpu_custom_call.1} parent=1 // pred_check
      _
    $region11: #{tpu_custom_call.1} parent=1 // pred_check_branch
      %20 = sbr.rel (0) target = $region13
    $region12: #{tpu_custom_call.1} parent=1 // pred_region
      _
    $region13: #{tpu_custom_call.1} parent=1 // pred_fallthru
      _
    // Predicated region
    $region14: #{tpu_custom_call.1} parent=1 // pred_check
      _
    $region15: #{tpu_custom_call.1} parent=1 // pred_check_branch
      %22 = sbr.rel (0) target = $region17
    $region16: #{tpu_custom_call.1} parent=1 // pred_region
      _
    $region17: #{tpu_custom_call.1} parent=1 // pred_fallthru
      _
    // Predicated region
    $region18: #{tpu_custom_call.1} parent=1 // pred_check
      _
    $region19: #{tpu_custom_call.1} parent=1 // pred_check_branch
      %24 = sbr.rel (0) target = $region21
    $region20: #{tpu_custom_call.1} parent=1 // pred_region
      _
    $region21: #{tpu_custom_call.1} parent=1 // pred_fallthru
      _
    // Predicated region
    $region22: #{tpu_custom_call.1} parent=1 // pred_check
      _
    $region23: #{tpu_custom_call.1} parent=1 // pred_check_branch
      %26 = sbr.rel (0) target = $region25
    $region24: #{tpu_custom_call.1} parent=1 // pred_region
      _
    $region25: #{tpu_custom_call.1} parent=1 // pred_fallthru
      _
    // Predicated region
    $region26: #{tpu_custom_call.1} parent=1 // pred_check
      _
    $region27: #{tpu_custom_call.1} parent=1 // pred_check_branch
      %28 = sbr.rel (0) target = $region29
    $region28: #{tpu_custom_call.1} parent=1 // pred_region
      _
    $region29: #{tpu_custom_call.1} parent=1 // pred_fallthru
      _
    // Predicated region
    $region30: #{tpu_custom_call.1} parent=1 // pred_check
      _
    $region31: #{tpu_custom_call.1} parent=1 // pred_check_branch
      %30 = sbr.rel (0) target = $region33
    $region32: #{tpu_custom_call.1} parent=1 // pred_region
      _
    $region33: #{tpu_custom_call.1} parent=1 // pred_fallthru
      _
    // Predicated region
    $region34: #{tpu_custom_call.1} parent=1 // pred_check
      _
    $region35: #{tpu_custom_call.1} parent=1 // pred_check_branch
      %32 = sbr.rel (0) target = $region37
    $region36: #{tpu_custom_call.1} parent=1 // pred_region
      _
    $region37: #{tpu_custom_call.1} parent=1 // pred_fallthru
      _
    %v33 = vld [vmem:[%s1] sm:$0xff]
    %v34 = vld [vmem:[%s1 + $0x8] sm:$0xff]
    %v35 = vld [vmem:[%s1 + $0x10] sm:$0xff]
    %v36 = vld [vmem:[%s1 + $0x18] sm:$0xff]
    %v37 = vld [vmem:[%s1 + $0x20] sm:$0xff]
    %v38 = vld [vmem:[%s1 + $0x28] sm:$0xff]
    %v39 = vld [vmem:[%s1 + $0x30] sm:$0xff]
    %v40 = vld [vmem:[%s1 + $0x38] sm:$0xff]
    %v41 = vld [vmem:[%s1 + $0x40] sm:$0xff]
    %v42 = vld [vmem:[%s1 + $0x48] sm:$0xff]
    %v43 = vld [vmem:[%s1 + $0x50] sm:$0xff]
    %v44 = vld [vmem:[%s1 + $0x58] sm:$0xff]
    %v45 = vld [vmem:[%s1 + $0x60] sm:$0xff]
    %v46 = vld [vmem:[%s1 + $0x68] sm:$0xff]
    %v47 = vld [vmem:[%s1 + $0x70] sm:$0xff]
    %v48 = vld [vmem:[%s1 + $0x78] sm:$0xff]
    %v49 = vld [vmem:[%s0] sm:$0xff]
    %v50 = vld [vmem:[%s2] sm:$0xff]
    %v51 = vld [vmem:[%s2 + $0x8] sm:$0xff]
    %v52 = vld [vmem:[%s2 + $0x10] sm:$0xff]
    %v53 = vld [vmem:[%s2 + $0x18] sm:$0xff]
    %v54 = vld [vmem:[%s2 + $0x20] sm:$0xff]
    %v55 = vld [vmem:[%s2 + $0x28] sm:$0xff]
    %v56 = vld [vmem:[%s2 + $0x30] sm:$0xff]
    %v57 = vld [vmem:[%s2 + $0x38] sm:$0xff]
    %v58 = vld [vmem:[%s2 + $0x40] sm:$0xff]
    %v59 = vld [vmem:[%s2 + $0x48] sm:$0xff]
    %v60 = vld [vmem:[%s2 + $0x50] sm:$0xff]
    %v61 = vld [vmem:[%s2 + $0x58] sm:$0xff]
    %v62 = vld [vmem:[%s2 + $0x60] sm:$0xff]
    %v63 = vld [vmem:[%s2 + $0x68] sm:$0xff]
    %v64 = vld [vmem:[%s2 + $0x70] sm:$0xff]
    %v65 = vld [vmem:[%s2 + $0x78] sm:$0xff]
    %67 = vset.pattern.permute.xlu0 0
    %68 = vperm.xlu0 %67, %v50
    %v69 = vpop.permute.xlu0 %68
    %72 = vset.pattern.permute.xlu0 0
    %73 = vperm.xlu0 %72, %v51
    %v74 = vpop.permute.xlu0 %73
    %77 = vset.pattern.permute.xlu0 0
    %78 = vperm.xlu0 %77, %v52
    %v79 = vpop.permute.xlu0 %78
    %82 = vset.pattern.permute.xlu0 0
    %83 = vperm.xlu0 %82, %v53
    %v84 = vpop.permute.xlu0 %83
    %87 = vset.pattern.permute.xlu0 0
    %88 = vperm.xlu0 %87, %v54
    %v89 = vpop.permute.xlu0 %88
    %92 = vset.pattern.permute.xlu0 0
    %93 = vperm.xlu0 %92, %v55
    %v94 = vpop.permute.xlu0 %93
    %97 = vset.pattern.permute.xlu0 0
    %98 = vperm.xlu0 %97, %v56
    %v99 = vpop.permute.xlu0 %98
    %102 = vset.pattern.permute.xlu0 0
    %103 = vperm.xlu0 %102, %v57
    %v104 = vpop.permute.xlu0 %103
    %107 = vset.pattern.permute.xlu0 0
    %108 = vperm.xlu0 %107, %v58
    %v109 = vpop.permute.xlu0 %108
    %112 = vset.pattern.permute.xlu0 0
    %113 = vperm.xlu0 %112, %v59
    %v114 = vpop.permute.xlu0 %113
    %117 = vset.pattern.permute.xlu0 0
    %118 = vperm.xlu0 %117, %v60
    %v119 = vpop.permute.xlu0 %118
    %122 = vset.pattern.permute.xlu0 0
    %123 = vperm.xlu0 %122, %v61
    %v124 = vpop.permute.xlu0 %123
    %127 = vset.pattern.permute.xlu0 0
    %128 = vperm.xlu0 %127, %v62
    %v129 = vpop.permute.xlu0 %128
    %132 = vset.pattern.permute.xlu0 0
    %133 = vperm.xlu0 %132, %v63
    %v134 = vpop.permute.xlu0 %133
    %137 = vset.pattern.permute.xlu0 0
    %138 = vperm.xlu0 %137, %v64
    %v139 = vpop.permute.xlu0 %138
    %142 = vset.pattern.permute.xlu0 0
    %143 = vperm.xlu0 %142, %v65
    %v144 = vpop.permute.xlu0 %143
    %vm146 = vcmask 64512
    %v148 = vsel %vm146, %v33, 0
    %v151 = vsel %vm146, %v34, 0
    %v154 = vsel %vm146, %v35, 0
    %v157 = vsel %vm146, %v36, 0
    %v160 = vsel %vm146, %v37, 0
    %v163 = vsel %vm146, %v38, 0
    %v166 = vsel %vm146, %v39, 0
    %v169 = vsel %vm146, %v40, 0
    %v172 = vsel %vm146, %v41, 0
    %v175 = vsel %vm146, %v42, 0
    %v178 = vsel %vm146, %v43, 0
    %v181 = vsel %vm146, %v44, 0
    %v184 = vsel %vm146, %v45, 0
    %v187 = vsel %vm146, %v46, 0
    %v190 = vsel %vm146, %v47, 0
    %v193 = vsel %vm146, %v48, 0
    %195 = vmatpush.msra.mxu0 0.0
    %196 = vmatpush.msra.mxu0 0.0
    %197 = vmatpush.msra.mxu0 0.0
    %198 = vmatpush.msra.mxu0 0.0
    %199 = vmatpush.msra.mxu0 0.0
    %200 = vmatpush.msra.mxu0 0.0
    %201 = vmatpush.msra.mxu0 0.0
    %202 = vmatpush.msra.mxu0 0.0
    %203 = vmatpush.msra.mxu0 0.0
    %204 = vmatpush.msra.mxu0 0.0
    %205 = vmatpush.msra.mxu0 0.0
    %206 = vmatpush.msra.mxu0 0.0
    %207 = vmatpush.msra.mxu0 0.0
    %208 = vmatpush.msra.mxu0 0.0
    %209 = vmatpush.msra.mxu0 0.0
    %210 = vmatpush.msra.mxu0 %v49
    %211 = vmatmul.f32.gmra.mxu0 %v148
    %v212 = vpop.f32.mrf.mxu0
    %v213 = vadd.f32 %v69, %v212
    %214 = vmatmul.f32.gmra.mxu0 %v151
    %v215 = vpop.f32.mrf.mxu0
    %v216 = vadd.f32 %v74, %v215
    %217 = vmatmul.f32.gmra.mxu0 %v154
    %v218 = vpop.f32.mrf.mxu0
    %v219 = vadd.f32 %v79, %v218
    %220 = vmatmul.f32.gmra.mxu0 %v157
    %v221 = vpop.f32.mrf.mxu0
    %v222 = vadd.f32 %v84, %v221
    %223 = vmatmul.f32.gmra.mxu0 %v160
    %v224 = vpop.f32.mrf.mxu0
    %v225 = vadd.f32 %v89, %v224
    %226 = vmatmul.f32.gmra.mxu0 %v163
    %v227 = vpop.f32.mrf.mxu0
    %v228 = vadd.f32 %v94, %v227
    %229 = vmatmul.f32.gmra.mxu0 %v166
    %v230 = vpop.f32.mrf.mxu0
    %v231 = vadd.f32 %v99, %v230
    %232 = vmatmul.f32.gmra.mxu0 %v169
    %v233 = vpop.f32.mrf.mxu0
    %v234 = vadd.f32 %v104, %v233
    %235 = vmatmul.f32.gmra.mxu0 %v172
    %v236 = vpop.f32.mrf.mxu0
    %v237 = vadd.f32 %v109, %v236
    %238 = vmatmul.f32.gmra.mxu0 %v175
    %v239 = vpop.f32.mrf.mxu0
    %v240 = vadd.f32 %v114, %v239
    %241 = vmatmul.f32.gmra.mxu0 %v178
    %v242 = vpop.f32.mrf.mxu0
    %v243 = vadd.f32 %v119, %v242
    %244 = vmatmul.f32.gmra.mxu0 %v181
    %v245 = vpop.f32.mrf.mxu0
    %v246 = vadd.f32 %v124, %v245
    %247 = vmatmul.f32.gmra.mxu0 %v184
    %v248 = vpop.f32.mrf.mxu0
    %v249 = vadd.f32 %v129, %v248
    %250 = vmatmul.f32.gmra.mxu0 %v187
    %v251 = vpop.f32.mrf.mxu0
    %v252 = vadd.f32 %v134, %v251
    %253 = vmatmul.f32.gmra.mxu0 %v190
    %v254 = vpop.f32.mrf.mxu0
    %v255 = vadd.f32 %v139, %v254
    %256 = vmatmul.f32.gmra.mxu0 %v193
    %v257 = vpop.f32.mrf.mxu0
    %v258 = vadd.f32 %v144, %v257
    %259 = vdwg.mxu0
    %v260 = vmax.f32 %v213, 0.0
    %v261 = vmax.f32 %v216, 0.0
    %v262 = vmax.f32 %v219, 0.0
    %v263 = vmax.f32 %v222, 0.0
    %v264 = vmax.f32 %v225, 0.0
    %v265 = vmax.f32 %v228, 0.0
    %v266 = vmax.f32 %v231, 0.0
    %v267 = vmax.f32 %v234, 0.0
    %v268 = vmax.f32 %v237, 0.0
    %v269 = vmax.f32 %v240, 0.0
    %v270 = vmax.f32 %v243, 0.0
    %v271 = vmax.f32 %v246, 0.0
    %v272 = vmax.f32 %v249, 0.0
    %v273 = vmax.f32 %v252, 0.0
    %v274 = vmax.f32 %v255, 0.0
    %v275 = vmax.f32 %v258, 0.0
    %v276 = vld [vmem:[%s3] sm:$0xff]
    %v277 = vld [vmem:[%s3 + $0x8] sm:$0xff]
    %v278 = vld [vmem:[%s3 + $0x10] sm:$0xff]
    %v279 = vld [vmem:[%s3 + $0x18] sm:$0xff]
    %v280 = vld [vmem:[%s3 + $0x20] sm:$0xff]
    %v281 = vld [vmem:[%s3 + $0x28] sm:$0xff]
    %v282 = vld [vmem:[%s3 + $0x30] sm:$0xff]
    %v283 = vld [vmem:[%s3 + $0x38] sm:$0xff]
    %v284 = vld [vmem:[%s4] sm:$0xff]
    %v285 = vld [vmem:[%s4 + $0x8] sm:$0xff]
    %v286 = vld [vmem:[%s4 + $0x10] sm:$0xff]
    %v287 = vld [vmem:[%s4 + $0x18] sm:$0xff]
    %v288 = vld [vmem:[%s4 + $0x20] sm:$0xff]
    %v289 = vld [vmem:[%s4 + $0x28] sm:$0xff]
    %v290 = vld [vmem:[%s4 + $0x30] sm:$0xff]
    %v291 = vld [vmem:[%s4 + $0x38] sm:$0xff]
    %293 = vset.pattern.permute.xlu0 0
    %294 = vperm.xlu0 %293, %v284
    %v295 = vpop.permute.xlu0 %294
    %298 = vset.pattern.permute.xlu0 0
    %299 = vperm.xlu0 %298, %v285
    %v300 = vpop.permute.xlu0 %299
    %303 = vset.pattern.permute.xlu0 0
    %304 = vperm.xlu0 %303, %v286
    %v305 = vpop.permute.xlu0 %304
    %308 = vset.pattern.permute.xlu0 0
    %309 = vperm.xlu0 %308, %v287
    %v310 = vpop.permute.xlu0 %309
    %313 = vset.pattern.permute.xlu0 0
    %314 = vperm.xlu0 %313, %v288
    %v315 = vpop.permute.xlu0 %314
    %318 = vset.pattern.permute.xlu0 0
    %319 = vperm.xlu0 %318, %v289
    %v320 = vpop.permute.xlu0 %319
    %323 = vset.pattern.permute.xlu0 0
    %324 = vperm.xlu0 %323, %v290
    %v325 = vpop.permute.xlu0 %324
    %328 = vset.pattern.permute.xlu0 0
    %329 = vperm.xlu0 %328, %v291
    %v330 = vpop.permute.xlu0 %329
    %332 = vmatpush.msra.mxu0 %v275
    %333 = vmatpush.msra.mxu0 %v274
    %334 = vmatpush.msra.mxu0 %v273
    %335 = vmatpush.msra.mxu0 %v272
    %336 = vmatpush.msra.mxu0 %v271
    %337 = vmatpush.msra.mxu0 %v270
    %338 = vmatpush.msra.mxu0 %v269
    %339 = vmatpush.msra.mxu0 %v268
    %340 = vmatpush.msra.mxu0 %v267
    %341 = vmatpush.msra.mxu0 %v266
    %342 = vmatpush.msra.mxu0 %v265
    %343 = vmatpush.msra.mxu0 %v264
    %344 = vmatpush.msra.mxu0 %v263
    %345 = vmatpush.msra.mxu0 %v262
    %346 = vmatpush.msra.mxu0 %v261
    %347 = vmatpush.msra.mxu0 %v260
    %348 = vmatmul.f32.gmra.mxu0 %v276
    %v349 = vpop.f32.mrf.mxu0
    %v350 = vadd.f32 %v295, %v349
    %351 = vmatmul.f32.gmra.mxu0 %v277
    %v352 = vpop.f32.mrf.mxu0
    %v353 = vadd.f32 %v300, %v352
    %354 = vmatmul.f32.gmra.mxu0 %v278
    %v355 = vpop.f32.mrf.mxu0
    %v356 = vadd.f32 %v305, %v355
    %357 = vmatmul.f32.gmra.mxu0 %v279
    %v358 = vpop.f32.mrf.mxu0
    %v359 = vadd.f32 %v310, %v358
    %360 = vmatmul.f32.gmra.mxu0 %v280
    %v361 = vpop.f32.mrf.mxu0
    %v362 = vadd.f32 %v315, %v361
    %363 = vmatmul.f32.gmra.mxu0 %v281
    %v364 = vpop.f32.mrf.mxu0
    %v365 = vadd.f32 %v320, %v364
    %366 = vmatmul.f32.gmra.mxu0 %v282
    %v367 = vpop.f32.mrf.mxu0
    %v368 = vadd.f32 %v325, %v367
    %369 = vmatmul.f32.gmra.mxu0 %v283
    %v370 = vpop.f32.mrf.mxu0
    %v371 = vadd.f32 %v330, %v370
    %372 = vdwg.mxu0
    %v373 = vmax.f32 %v350, 0.0
    %v374 = vmax.f32 %v353, 0.0
    %v375 = vmax.f32 %v356, 0.0
    %v376 = vmax.f32 %v359, 0.0
    %v377 = vmax.f32 %v362, 0.0
    %v378 = vmax.f32 %v365, 0.0
    %v379 = vmax.f32 %v368, 0.0
    %v380 = vmax.f32 %v371, 0.0
    %v381 = vld [vmem:[%s5] sm:$0xff]
    %v382 = vld [vmem:[%s5 + $0x8] sm:$0xff]
    %v383 = vld [vmem:[%s6] sm:$0xff]
    %v384 = vld [vmem:[%s6 + $0x8] sm:$0xff]
    %386 = vset.pattern.permute.xlu0 0
    %387 = vperm.xlu0 %386, %v383
    %v388 = vpop.permute.xlu0 %387
    %391 = vset.pattern.permute.xlu0 0
    %392 = vperm.xlu0 %391, %v384
    %v393 = vpop.permute.xlu0 %392
    %vm395 = vcmask 523264
    %v397 = vsel %vm395, %v381, 0
    %v400 = vsel %vm395, %v382, 0
    %402 = vmatpush.msra.mxu0 0.0
    %403 = vmatpush.msra.mxu0 0.0
    %404 = vmatpush.msra.mxu0 0.0
    %405 = vmatpush.msra.mxu0 0.0
    %406 = vmatpush.msra.mxu0 0.0
    %407 = vmatpush.msra.mxu0 0.0
    %408 = vmatpush.msra.mxu0 0.0
    %409 = vmatpush.msra.mxu0 0.0
    %410 = vmatpush.msra.mxu0 %v380
    %411 = vmatpush.msra.mxu0 %v379
    %412 = vmatpush.msra.mxu0 %v378
    %413 = vmatpush.msra.mxu0 %v377
    %414 = vmatpush.msra.mxu0 %v376
    %415 = vmatpush.msra.mxu0 %v375
    %416 = vmatpush.msra.mxu0 %v374
    %417 = vmatpush.msra.mxu0 %v373
    %418 = vmatmul.f32.gmra.mxu0 %v397
    %v419 = vpop.f32.mrf.mxu0
    %v420 = vadd.f32 %v388, %v419
    %421 = vmatmul.f32.gmra.mxu0 %v400
    %v422 = vpop.f32.mrf.mxu0
    %v423 = vadd.f32 %v393, %v422
    %424 = vdwg.mxu0
    %v425 = vmax.f32 %v420, 0.0
    %v426 = vmax.f32 %v423, 0.0
    %v427 = vld [vmem:[%s7] sm:$0xff]
    %v428 = vld [vmem:[%s8] sm:$0xff]
    %430 = vset.pattern.permute.xlu0 0
    %431 = vperm.xlu0 %430, %v428
    %v432 = vpop.permute.xlu0 %431
    %vm434 = vcmask 130048
    %v436 = vsel %vm434, %v427, 0
    %438 = vmatpush.msra.mxu0 0.0
    %439 = vmatpush.msra.mxu0 0.0
    %440 = vmatpush.msra.mxu0 0.0
    %441 = vmatpush.msra.mxu0 0.0
    %442 = vmatpush.msra.mxu0 0.0
    %443 = vmatpush.msra.mxu0 0.0
    %444 = vmatpush.msra.mxu0 0.0
    %445 = vmatpush.msra.mxu0 0.0
    %446 = vmatpush.msra.mxu0 0.0
    %447 = vmatpush.msra.mxu0 0.0
    %448 = vmatpush.msra.mxu0 0.0
    %449 = vmatpush.msra.mxu0 0.0
    %450 = vmatpush.msra.mxu0 0.0
    %451 = vmatpush.msra.mxu0 0.0
    %452 = vmatpush.msra.mxu0 %v426
    %453 = vmatpush.msra.mxu0 %v425
    %454 = vmatmul.f32.gmra.mxu0 %v436
    %v455 = vpop.f32.mrf.mxu0
    %v456 = vadd.f32 %v432, %v455
    %457 = vdwg.mxu0
    %vm458 = vcmask 1041408
    %v459 = vsel %vm458, %v456, 0.0
    %v460 = vrot.slane %v459, 4
    %v461 = vadd.f32 %v459, %v460
    %v462 = vrot.slane %v461, 2
    %v463 = vadd.f32 %v461, %v462
    %v464 = vrot.slane %v463, 1
    %v465 = vadd.f32 %v463, %v464
    %v466 = vrcp.pop 2.0
    %v467 = vmul.f32 2.0, %v466
    %v468 = vsub.f32 1.0, %v467
    %v469 = vmul.f32 %v466, %v468
    %v470 = vadd.f32 %v466, %v469
    %vm471 = vweird.f32 %v466
    %v472 = vsel %vm471, %v466, %v470
    %v473 = vmul.f32 %v465, %v472
    %v474 = vsub.f32 %v456, %v473
    %v475 = vperm.slane %v456, 2
    %v476 = vadd.f32 %v475, %v474
    %477 = vst [vmem:[#allocation2] sm:$0x3] %v476
    // Predicated region
    $region38: #{tpu_custom_call.1} parent=1 // pred_check
      _
    $region39: #{tpu_custom_call.1} parent=1 // pred_check_branch
      %479 = sbr.rel (0) target = $region41
    $region40: #{tpu_custom_call.1} parent=1 // pred_region
      %481 = vsyncadd [#allocation3], 0
      %s483 = sshll.u32 [#allocation2], 4
      %s484 = int_to_ptr.vmem [resolvable:$true] %s483
      %s485 = sshll.u32 %s9, 4
      %s486 = int_to_ptr.hbm [resolvable:$true] %s485
      %488 = dma.vmem_to_hbm [thread:$0]  %s484, 32, %s486, [#allocation3]
    $region41: #{tpu_custom_call.1} parent=1 // pred_fallthru
      _
    // Predicated region
    $region42: #{tpu_custom_call.1} parent=1 // pred_check
      _
    $region43: #{tpu_custom_call.1} parent=1 // pred_check_branch
      %490 = sbr.rel (0) target = $region45
    $region44: #{tpu_custom_call.1} parent=1 // pred_region
      %492 = dma.done [#allocation3], 32
    $region45: #{tpu_custom_call.1} parent=1 // pred_fallthru
      _
    %493 = vsyncpa [#allocation3], 1

</llo_original>
